<compile_context>
chip_gen: v7x
topology: tpu7x:2x2x1
jax: 0.10.0
libtpu: 0.0.40
codegen_flags: <defaults>
</compile_context>

<pallas_src>
import jax
import jax.numpy as jnp
from jax.experimental import pallas as pl
from jax.experimental.pallas import tpu as pltpu


def _iba_kernel(x_ref, eps_ref, mean_ref, std_ref, scale_a_ref, scale_t_ref,
                cap_const_ref, t_ref, cap_ref):
    # x/eps/t/cap blocks: (TR, TC).  Batch-invariant blocks: (1, TC).
    x = x_ref[...]
    eps = eps_ref[...]
    mean = mean_ref[...]
    std = std_ref[...]
    scale_a = scale_a_ref[...]          # lamb / std
    scale_t = scale_t_ref[...]          # noise_std * std
    cap_const = cap_const_ref[...]      # -0.5 * (1 + log_var - exp(log_var))

    mu = (x - mean) * scale_a           # == ((x - mean) / std) * sigmoid(alpha)
    t_ref[...] = mu * std + scale_t * eps + mean
    cap_ref[...] = cap_const + 0.5 * (mu * mu)


def _pick_col_tile(n_cols: int, n_rows: int, target_bytes: int = 1 << 20) -> int:
    """Largest multiple-of-128 divisor of n_cols whose (n_rows, tc) f32 block
    stays under target_bytes.  Falls back to the full extent when n_cols is not
    lane-aligned (full-extent blocks are always legal)."""
    if n_cols % 128 != 0:
        return n_cols
    budget_cols = max(128, target_bytes // (4 * n_rows))
    best = 128
    for tc in range(128, n_cols + 1, 128):
        if n_cols % tc == 0 and tc <= budget_cols:
            best = tc
    return best


def information_bottleneck_forward(x, alpha, mean, std, eps):
    """Returns (t, buffer_capacity), both shaped like x."""
    B, S, H = x.shape
    N = S * H

    # ---- Batch-invariant precompute (done once, in the wrapper) -------------
    alpha2 = alpha.reshape(1, N).astype(jnp.float32)
    mean2 = mean.reshape(1, N).astype(jnp.float32)
    std2 = std.reshape(1, N).astype(jnp.float32)

    lamb = jax.nn.sigmoid(alpha2)
    noise_var = (1.0 - lamb) ** 2
    log_var = jnp.log(noise_var)                      # unclamped (for capacity)
    log_var_c = jnp.clip(log_var, -10.0, 10.0)
    noise_std = jnp.exp(0.5 * log_var_c)

    scale_a = lamb / std2                             # mu  = (x - mean) * scale_a
    scale_t = noise_std * std2                        # t   = mu*std + scale_t*eps + mean
    cap_const = -0.5 * (1.0 + log_var - jnp.exp(log_var))

    # ---- Lane-dense 2D slabs ------------------------------------------------
    x2 = x.reshape(B, N).astype(jnp.float32)
    eps2 = eps.reshape(B, N).astype(jnp.float32)

    tc = _pick_col_tile(N, B)
    grid = (N // tc,)

    big_spec = pl.BlockSpec((B, tc), lambda j: (0, j))     # batch-sized streams
    small_spec = pl.BlockSpec((1, tc), lambda j: (0, j))   # batch-invariant rows

    t2, cap2 = pl.pallas_call(
        _iba_kernel,
        out_shape=(
            jax.ShapeDtypeStruct((B, N), jnp.float32),
            jax.ShapeDtypeStruct((B, N), jnp.float32),
        ),
        grid_spec=pltpu.PrefetchScalarGridSpec(
            num_scalar_prefetch=0,
            grid=grid,
            in_specs=[
                big_spec,      # x
                big_spec,      # eps
                small_spec,    # mean
                small_spec,    # std
                small_spec,    # scale_a = lamb / std
                small_spec,    # scale_t = noise_std * std
                small_spec,    # cap_const
            ],
            out_specs=[big_spec, big_spec],
        ),
        compiler_params=pltpu.CompilerParams(
            dimension_semantics=("parallel",)),
    )(x2, eps2, mean2, std2, scale_a, scale_t, cap_const)

    return t2.reshape(B, S, H), cap2.reshape(B, S, H)


def _reference(x, alpha, mean, std, eps):
    # Pure-JAX transcription of the PyTorch forward (bit-for-bit op order).
    lamb = jax.nn.sigmoid(alpha)
    lamb = jnp.broadcast_to(lamb, x.shape)
    x_norm = (x - mean) / std
    noise_var = (1.0 - lamb) ** 2
    mu = x_norm * lamb
    log_var = jnp.log(noise_var)
    log_var_c = jnp.clip(log_var, -10.0, 10.0)
    noise_std = jnp.exp(0.5 * log_var_c)
    t_norm = mu + noise_std * eps
    cap = -0.5 * (1.0 + log_var - mu ** 2 - jnp.exp(log_var))
    t = t_norm * std + mean
    return t, cap


if __name__ == "__main__":
    B, S, H = 2, 8, 32
    key = jax.random.PRNGKey(0)
    k_x, k_mean, k_std, k_eps = jax.random.split(key, 4)

    # Deterministic "statistics" (would normally be estimated from data)
    mean = jax.random.normal(k_mean, (S, H), dtype=jnp.float32)
    std = jnp.abs(jax.random.normal(k_std, (S, H), dtype=jnp.float32)) + 0.5

    # nn.Parameter alpha, initialized to initial_value = 5.0 (reset_alpha)
    alpha = jnp.full((1, S, H), 5.0, dtype=jnp.float32)

    # Input (bert_out) and noise sample
    x = jax.random.normal(k_x, (B, S, H), dtype=jnp.float32)
    eps = jax.random.normal(k_eps, (B, S, H), dtype=jnp.float32)

    t, cap = information_bottleneck_forward(x, alpha, mean, std, eps)
    jax.block_until_ready((t, cap))

    t_ref, cap_ref = _reference(x, alpha, mean, std, eps)
    assert t.shape == (B, S, H) and cap.shape == (B, S, H)
    assert jnp.allclose(t, t_ref, atol=1e-5, rtol=1e-5)
    assert jnp.allclose(cap, cap_ref, atol=1e-5, rtol=1e-5)

    print("KERNEL_OK")
</pallas_src>

<mosaic_0001>
module attributes {stable_mosaic.version = 11 : i64} {
  func.func @_iba_kernel(%arg0: i32, %arg1: memref<2x256xf32, #tpu.memory_space<vmem>>, %arg2: memref<2x256xf32, #tpu.memory_space<vmem>>, %arg3: memref<1x256xf32, #tpu.memory_space<vmem>>, %arg4: memref<1x256xf32, #tpu.memory_space<vmem>>, %arg5: memref<1x256xf32, #tpu.memory_space<vmem>>, %arg6: memref<1x256xf32, #tpu.memory_space<vmem>>, %arg7: memref<1x256xf32, #tpu.memory_space<vmem>>, %arg8: memref<2x256xf32, #tpu.memory_space<vmem>>, %arg9: memref<2x256xf32, #tpu.memory_space<vmem>>) attributes {dimension_semantics = [#tpu.dimension_semantics<parallel>], iteration_bounds = array<i64: 1>, scalar_prefetch = 0 : i64, scratch_operands = 0 : i64, tpu.core_type = #tpu.core_type<tc>, window_params = [{transform_indices = @transform_0, window_bounds = array<i64: 2, 256>}, {transform_indices = @transform_1, window_bounds = array<i64: 2, 256>}, {transform_indices = @transform_2, window_bounds = array<i64: 1, 256>}, {transform_indices = @transform_3, window_bounds = array<i64: 1, 256>}, {transform_indices = @transform_4, window_bounds = array<i64: 1, 256>}, {transform_indices = @transform_5, window_bounds = array<i64: 1, 256>}, {transform_indices = @transform_6, window_bounds = array<i64: 1, 256>}, {transform_indices = @transform_7, window_bounds = array<i64: 2, 256>}, {transform_indices = @transform_8, window_bounds = array<i64: 2, 256>}]} {
    %c0 = arith.constant 0 : index
    %c0_0 = arith.constant 0 : index
    %0 = vector.load %arg1[%c0, %c0_0] : memref<2x256xf32, #tpu.memory_space<vmem>>, vector<2x256xf32>
    %c0_1 = arith.constant 0 : index
    %c0_2 = arith.constant 0 : index
    %1 = vector.load %arg2[%c0_1, %c0_2] : memref<2x256xf32, #tpu.memory_space<vmem>>, vector<2x256xf32>
    %c0_3 = arith.constant 0 : index
    %c0_4 = arith.constant 0 : index
    %2 = vector.load %arg3[%c0_3, %c0_4] : memref<1x256xf32, #tpu.memory_space<vmem>>, vector<1x256xf32>
    %c0_5 = arith.constant 0 : index
    %c0_6 = arith.constant 0 : index
    %3 = vector.load %arg4[%c0_5, %c0_6] : memref<1x256xf32, #tpu.memory_space<vmem>>, vector<1x256xf32>
    %c0_7 = arith.constant 0 : index
    %c0_8 = arith.constant 0 : index
    %4 = vector.load %arg5[%c0_7, %c0_8] : memref<1x256xf32, #tpu.memory_space<vmem>>, vector<1x256xf32>
    %c0_9 = arith.constant 0 : index
    %c0_10 = arith.constant 0 : index
    %5 = vector.load %arg6[%c0_9, %c0_10] : memref<1x256xf32, #tpu.memory_space<vmem>>, vector<1x256xf32>
    %c0_11 = arith.constant 0 : index
    %c0_12 = arith.constant 0 : index
    %6 = vector.load %arg7[%c0_11, %c0_12] : memref<1x256xf32, #tpu.memory_space<vmem>>, vector<1x256xf32>
    %7 = vector.broadcast %2 : vector<1x256xf32> to vector<2x256xf32>
    %8 = arith.subf %0, %7 : vector<2x256xf32>
    %9 = vector.broadcast %4 : vector<1x256xf32> to vector<2x256xf32>
    %10 = arith.mulf %8, %9 : vector<2x256xf32>
    %11 = vector.broadcast %3 : vector<1x256xf32> to vector<2x256xf32>
    %12 = arith.mulf %10, %11 : vector<2x256xf32>
    %13 = vector.broadcast %5 : vector<1x256xf32> to vector<2x256xf32>
    %14 = arith.mulf %13, %1 : vector<2x256xf32>
    %15 = arith.addf %12, %14 : vector<2x256xf32>
    %16 = vector.broadcast %2 : vector<1x256xf32> to vector<2x256xf32>
    %17 = arith.addf %15, %16 : vector<2x256xf32>
    %c0_13 = arith.constant 0 : index
    %c0_14 = arith.constant 0 : index
    %18 = vector.load %arg8[%c0_13, %c0_14] : memref<2x256xf32, #tpu.memory_space<vmem>>, vector<2x256xf32>
    tpu.vector_store %arg8[%c0_13, %c0_14], %17 {strides = array<i32>} : memref<2x256xf32, #tpu.memory_space<vmem>>, vector<2x256xf32>,
    %19 = arith.mulf %10, %10 : vector<2x256xf32>
    %cst = arith.constant 5.000000e-01 : f32
    %20 = vector.broadcast %cst : f32 to vector<2x256xf32>
    %21 = arith.mulf %20, %19 : vector<2x256xf32>
    %22 = vector.broadcast %6 : vector<1x256xf32> to vector<2x256xf32>
    %23 = arith.addf %22, %21 : vector<2x256xf32>
    %c0_15 = arith.constant 0 : index
    %c0_16 = arith.constant 0 : index
    %24 = vector.load %arg9[%c0_15, %c0_16] : memref<2x256xf32, #tpu.memory_space<vmem>>, vector<2x256xf32>
    tpu.vector_store %arg9[%c0_15, %c0_16], %23 {strides = array<i32>} : memref<2x256xf32, #tpu.memory_space<vmem>>, vector<2x256xf32>,
    return
  }
  func.func @transform_0(%arg0: i32) -> (i32, i32) {
    %c0_i32 = arith.constant 0 : i32
    %c0_i32_0 = arith.constant 0 : i32
    return %c0_i32, %arg0 : i32, i32
  }
  func.func @transform_1(%arg0: i32) -> (i32, i32) {
    %c0_i32 = arith.constant 0 : i32
    %c0_i32_0 = arith.constant 0 : i32
    return %c0_i32, %arg0 : i32, i32
  }
  func.func @transform_2(%arg0: i32) -> (i32, i32) {
    %c0_i32 = arith.constant 0 : i32
    %c0_i32_0 = arith.constant 0 : i32
    return %c0_i32, %arg0 : i32, i32
  }
  func.func @transform_3(%arg0: i32) -> (i32, i32) {
    %c0_i32 = arith.constant 0 : i32
    %c0_i32_0 = arith.constant 0 : i32
    return %c0_i32, %arg0 : i32, i32
  }
  func.func @transform_4(%arg0: i32) -> (i32, i32) {
    %c0_i32 = arith.constant 0 : i32
    %c0_i32_0 = arith.constant 0 : i32
    return %c0_i32, %arg0 : i32, i32
  }
  func.func @transform_5(%arg0: i32) -> (i32, i32) {
    %c0_i32 = arith.constant 0 : i32
    %c0_i32_0 = arith.constant 0 : i32
    return %c0_i32, %arg0 : i32, i32
  }
  func.func @transform_6(%arg0: i32) -> (i32, i32) {
    %c0_i32 = arith.constant 0 : i32
    %c0_i32_0 = arith.constant 0 : i32
    return %c0_i32, %arg0 : i32, i32
  }
  func.func @transform_7(%arg0: i32) -> (i32, i32) {
    %c0_i32 = arith.constant 0 : i32
    %c0_i32_0 = arith.constant 0 : i32
    return %c0_i32, %arg0 : i32, i32
  }
  func.func @transform_8(%arg0: i32) -> (i32, i32) {
    %c0_i32 = arith.constant 0 : i32
    %c0_i32_0 = arith.constant 0 : i32
    return %c0_i32, %arg0 : i32, i32
  }
}

</mosaic_0001>

<llo_original>
// kernel: tpu_custom_call.1
$region0: #{tpu_custom_call.1}
  #allocation0 [shape = 'u32[]', space=smem, size = 0x4, offset = 0x4, fixed_abs, tag = 'smem constant byte address 0x4 - core index']
  #allocation1 [shape = 'u32[144,128]{1,0:T(1,128)}', space=vmem, size = 0x12000, scoped, tag = 'internal scratch']
  %s0 = inlined_call_operand.hbm [shape: f32[2,256], index: 0, kind: input, shape index: {}]
  %s1 = inlined_call_operand.hbm [shape: f32[2,256], index: 1, kind: input, shape index: {}]
  %s2 = inlined_call_operand.vmem [shape: f32[1,256], index: 2, kind: input, shape index: {}]
  %s3 = inlined_call_operand.vmem [shape: f32[1,256], index: 3, kind: input, shape index: {}]
  %s4 = inlined_call_operand.vmem [shape: f32[1,256], index: 4, kind: input, shape index: {}]
  %s5 = inlined_call_operand.vmem [shape: f32[1,256], index: 5, kind: input, shape index: {}]
  %s6 = inlined_call_operand.vmem [shape: f32[1,256], index: 6, kind: input, shape index: {}]
  %s7 = inlined_call_operand.hbm [shape: f32[2,256], index: 7, kind: output, shape index: {0}]
  %s8 = inlined_call_operand.hbm [shape: f32[2,256], index: 8, kind: output, shape index: {1}]
  %9 = xla_tuple %s7, %s8
  %s10 = sld [smem:[#allocation0]]
  $region54: #{tpu_custom_call.1} parent=0
    _
  %s12 = ssub.s32 1, %s10
  %s13 = scalar_select 0, %s12, %s10
  $region1: #{tpu_custom_call.1} parent=0
    #allocation2 [shape = 'u8[2048]{0}', space=vmem, size = 0x800, scoped, tag = 'input window, operand 0, single buffered']
    #allocation3 [shape = 's32[1]{0}', space=sflag, size = 0x4, scoped, tag = 'scoped memory for tpu_custom_call.1']
    #allocation4 [shape = 's32[1]{0}', space=sflag, size = 0x4, scoped, tag = 'scoped memory for tpu_custom_call.1']
    #allocation5 [shape = 'u8[2048]{0}', space=vmem, size = 0x800, scoped, tag = 'input window, operand 1, single buffered']
    #allocation6 [shape = 's32[1]{0}', space=sflag, size = 0x4, scoped, tag = 'scoped memory for tpu_custom_call.1']
    #allocation7 [shape = 'u8[2048]{0}', space=vmem, size = 0x800, scoped, tag = 'output window, operand 0, single buffered']
    #allocation8 [shape = 'u8[2048]{0}', space=vmem, size = 0x800, scoped, tag = 'output window, operand 1, single buffered']
    #allocation9 [shape = 's32[1]{0}', space=sflag, size = 0x4, scoped, tag = 'scoped memory for tpu_custom_call.1']
    %14 = vsyncpa [#allocation3], 0
    %15 = vsyncpa [#allocation6], 0
    %16 = vsyncpa [#allocation4], 0
    %17 = vsyncpa [#allocation9], 0
    // Predicated region
    $region2: #{tpu_custom_call.1} parent=1 // pred_check
      _
    $region3: #{tpu_custom_call.1} parent=1 // pred_check_branch
      %19 = sbr.rel (0) target = $region5
    $region4: #{tpu_custom_call.1} parent=1 // pred_region
      %s21 = ssub.s32 64, 64
      %22 = vsyncadd [#allocation3], %s21
      %s24 = sshll.u32 [#allocation2], 4
      %s25 = int_to_ptr.vmem [resolvable:$true] %s24
      %27 = dma.hbm_to_vmem [thread:$0]  %s0, 64, %s25, [#allocation3]
    $region5: #{tpu_custom_call.1} parent=1 // pred_fallthru
      _
    // Predicated region
    $region6: #{tpu_custom_call.1} parent=1 // pred_check
      _
    $region7: #{tpu_custom_call.1} parent=1 // pred_check_branch
      %29 = sbr.rel (0) target = $region9
    $region8: #{tpu_custom_call.1} parent=1 // pred_region
      %s31 = ssub.s32 64, 64
      %32 = vsyncadd [#allocation6], %s31
      %s34 = sshll.u32 [#allocation5], 4
      %s35 = int_to_ptr.vmem [resolvable:$true] %s34
      %37 = dma.hbm_to_vmem [thread:$0]  %s1, 64, %s35, [#allocation6]
    $region9: #{tpu_custom_call.1} parent=1 // pred_fallthru
      _
    // Predicated region
    $region10: #{tpu_custom_call.1} parent=1 // pred_check
      _
    $region11: #{tpu_custom_call.1} parent=1 // pred_check_branch
      %39 = sbr.rel (0) target = $region13
    $region12: #{tpu_custom_call.1} parent=1 // pred_region
      _
    $region13: #{tpu_custom_call.1} parent=1 // pred_fallthru
      _
    // Predicated region
    $region14: #{tpu_custom_call.1} parent=1 // pred_check
      _
    $region15: #{tpu_custom_call.1} parent=1 // pred_check_branch
      %41 = sbr.rel (0) target = $region17
    $region16: #{tpu_custom_call.1} parent=1 // pred_region
      _
    $region17: #{tpu_custom_call.1} parent=1 // pred_fallthru
      _
    // Predicated region
    $region18: #{tpu_custom_call.1} parent=1 // pred_check
      _
    $region19: #{tpu_custom_call.1} parent=1 // pred_check_branch
      %43 = sbr.rel (0) target = $region21
    $region20: #{tpu_custom_call.1} parent=1 // pred_region
      _
    $region21: #{tpu_custom_call.1} parent=1 // pred_fallthru
      _
    // Predicated region
    $region22: #{tpu_custom_call.1} parent=1 // pred_check
      _
    $region23: #{tpu_custom_call.1} parent=1 // pred_check_branch
      %45 = sbr.rel (0) target = $region25
    $region24: #{tpu_custom_call.1} parent=1 // pred_region
      _
    $region25: #{tpu_custom_call.1} parent=1 // pred_fallthru
      _
    // Predicated region
    $region26: #{tpu_custom_call.1} parent=1 // pred_check
      _
    $region27: #{tpu_custom_call.1} parent=1 // pred_check_branch
      %47 = sbr.rel (0) target = $region29
    $region28: #{tpu_custom_call.1} parent=1 // pred_region
      _
    $region29: #{tpu_custom_call.1} parent=1 // pred_fallthru
      _
    // Predicated region
    $region30: #{tpu_custom_call.1} parent=1 // pred_check
      _
    $region31: #{tpu_custom_call.1} parent=1 // pred_check_branch
      %49 = sbr.rel (0) target = $region33
    $region32: #{tpu_custom_call.1} parent=1 // pred_region
      %50 = dma.done [#allocation3], 64
    $region33: #{tpu_custom_call.1} parent=1 // pred_fallthru
      _
    // Predicated region
    $region34: #{tpu_custom_call.1} parent=1 // pred_check
      _
    $region35: #{tpu_custom_call.1} parent=1 // pred_check_branch
      %52 = sbr.rel (0) target = $region37
    $region36: #{tpu_custom_call.1} parent=1 // pred_region
      %53 = dma.done [#allocation6], 64
    $region37: #{tpu_custom_call.1} parent=1 // pred_fallthru
      _
    %v54 = vld [vmem:[#allocation2] sm:$0xf]
    %v55 = vld [vmem:[#allocation5] sm:$0xf]
    %v56 = vld [vmem:[%s2] sm:$0x3]
    %v57 = vld [vmem:[%s3] sm:$0x3]
    %v58 = vld [vmem:[%s4] sm:$0x3]
    %v59 = vld [vmem:[%s5] sm:$0x3]
    %v60 = vld [vmem:[%s6] sm:$0x3]
    %v62 = vlaneseq
    %v63 = vshrl.u32 %v62, 7
    %v64 = vsub.s32 0, %v63
    %v65 = vrot.slane %v56, %v64
    %v66 = vlaneseq
    %v67 = vshrl.u32 %v66, 7
    %v68 = vsub.s32 1, %v67
    %v69 = vrot.slane %v56, %v68
    %v70 = vcombine.low %v65, %v69
    %v72 = vunpack.c.l.s4 1983009808
    %v73 = vunpack.c.0.s8 %v72
    %v74 = vlaneseq
    %v75 = vshrl.u32 %v74, 7
    %v76 = vsub.s32 %v73, %v75
    %v77 = vrot.slane %v70, %v76
    %v79 = vsub.f32 %v54, %v77
    %v81 = vlaneseq
    %v82 = vshrl.u32 %v81, 7
    %v83 = vsub.s32 0, %v82
    %v84 = vrot.slane %v58, %v83
    %v85 = vlaneseq
    %v86 = vshrl.u32 %v85, 7
    %v87 = vsub.s32 1, %v86
    %v88 = vrot.slane %v58, %v87
    %v89 = vcombine.low %v84, %v88
    %v91 = vunpack.c.l.s4 1983009808
    %v92 = vunpack.c.0.s8 %v91
    %v93 = vlaneseq
    %v94 = vshrl.u32 %v93, 7
    %v95 = vsub.s32 %v92, %v94
    %v96 = vrot.slane %v89, %v95
    %v98 = vmul.f32 %v79, %v96
    %v100 = vlaneseq
    %v101 = vshrl.u32 %v100, 7
    %v102 = vsub.s32 0, %v101
    %v103 = vrot.slane %v57, %v102
    %v104 = vlaneseq
    %v105 = vshrl.u32 %v104, 7
    %v106 = vsub.s32 1, %v105
    %v107 = vrot.slane %v57, %v106
    %v108 = vcombine.low %v103, %v107
    %v110 = vunpack.c.l.s4 1983009808
    %v111 = vunpack.c.0.s8 %v110
    %v112 = vlaneseq
    %v113 = vshrl.u32 %v112, 7
    %v114 = vsub.s32 %v111, %v113
    %v115 = vrot.slane %v108, %v114
    %v117 = vmul.f32 %v98, %v115
    %v119 = vlaneseq
    %v120 = vshrl.u32 %v119, 7
    %v121 = vsub.s32 0, %v120
    %v122 = vrot.slane %v59, %v121
    %v123 = vlaneseq
    %v124 = vshrl.u32 %v123, 7
    %v125 = vsub.s32 1, %v124
    %v126 = vrot.slane %v59, %v125
    %v131 = vunpack.c.l.s4 1983009808
    %v132 = vunpack.c.0.s8 %v131
    %v133 = vlaneseq
    %v134 = vshrl.u32 %v133, 7
    %v135 = vsub.s32 %v132, %v134
    %v136 = vrot.slane %v55, %v135
    %v137 = vcombine.high %v136, %v136
    %v140 = vmul.f32 %v122, %v136
    %v141 = vmul.f32 %v126, %v137
    %v144 = vcombine.low %v140, %v141
    %v146 = vunpack.c.l.s4 1983009808
    %v147 = vunpack.c.0.s8 %v146
    %v148 = vlaneseq
    %v149 = vshrl.u32 %v148, 7
    %v150 = vsub.s32 %v147, %v149
    %v151 = vrot.slane %v144, %v150
    %v153 = vadd.f32 %v117, %v151
    %v154 = vadd.f32 %v153, %v77
    %155 = vst [vmem:[#allocation7] sm:$0xf] %v154
    %v156 = vmul.f32 %v98, %v98
    %v157 = vmul.f32 %v156, 0.5
    %v159 = vlaneseq
    %v160 = vshrl.u32 %v159, 7
    %v161 = vsub.s32 0, %v160
    %v162 = vrot.slane %v60, %v161
    %v163 = vlaneseq
    %v164 = vshrl.u32 %v163, 7
    %v165 = vsub.s32 1, %v164
    %v166 = vrot.slane %v60, %v165
    %v171 = vunpack.c.l.s4 1983009808
    %v172 = vunpack.c.0.s8 %v171
    %v173 = vlaneseq
    %v174 = vshrl.u32 %v173, 7
    %v175 = vsub.s32 %v172, %v174
    %v176 = vrot.slane %v157, %v175
    %v177 = vcombine.high %v176, %v176
    %v180 = vadd.f32 %v162, %v176
    %v181 = vadd.f32 %v166, %v177
    %v184 = vcombine.low %v180, %v181
    %v186 = vunpack.c.l.s4 1983009808
    %v187 = vunpack.c.0.s8 %v186
    %v188 = vlaneseq
    %v189 = vshrl.u32 %v188, 7
    %v190 = vsub.s32 %v187, %v189
    %v191 = vrot.slane %v184, %v190
    %193 = vst [vmem:[#allocation8] sm:$0xf] %v191
    // Predicated region
    $region38: #{tpu_custom_call.1} parent=1 // pred_check
      _
    $region39: #{tpu_custom_call.1} parent=1 // pred_check_branch
      %195 = sbr.rel (0) target = $region41
    $region40: #{tpu_custom_call.1} parent=1 // pred_region
      %s197 = ssub.s32 64, 64
      %198 = vsyncadd [#allocation4], %s197
      %s200 = sshll.u32 [#allocation7], 4
      %s201 = int_to_ptr.vmem [resolvable:$true] %s200
      %203 = dma.vmem_to_hbm [thread:$0]  %s201, 64, %s7, [#allocation4]
    $region41: #{tpu_custom_call.1} parent=1 // pred_fallthru
      _
    // Predicated region
    $region42: #{tpu_custom_call.1} parent=1 // pred_check
      _
    $region43: #{tpu_custom_call.1} parent=1 // pred_check_branch
      %205 = sbr.rel (0) target = $region45
    $region44: #{tpu_custom_call.1} parent=1 // pred_region
      %s207 = ssub.s32 64, 64
      %208 = vsyncadd [#allocation9], %s207
      %s210 = sshll.u32 [#allocation8], 4
      %s211 = int_to_ptr.vmem [resolvable:$true] %s210
      %213 = dma.vmem_to_hbm [thread:$0]  %s211, 64, %s8, [#allocation9]
    $region45: #{tpu_custom_call.1} parent=1 // pred_fallthru
      _
    // Predicated region
    $region46: #{tpu_custom_call.1} parent=1 // pred_check
      _
    $region47: #{tpu_custom_call.1} parent=1 // pred_check_branch
      %215 = sbr.rel (0) target = $region49
    $region48: #{tpu_custom_call.1} parent=1 // pred_region
      %216 = dma.done [#allocation4], 64
    $region49: #{tpu_custom_call.1} parent=1 // pred_fallthru
      _
    // Predicated region
    $region50: #{tpu_custom_call.1} parent=1 // pred_check
      _
    $region51: #{tpu_custom_call.1} parent=1 // pred_check_branch
      %218 = sbr.rel (0) target = $region53
    $region52: #{tpu_custom_call.1} parent=1 // pred_region
      %219 = dma.done [#allocation9], 64
    $region53: #{tpu_custom_call.1} parent=1 // pred_fallthru
      _
    %220 = vsyncpa [#allocation3], 1
    %221 = vsyncpa [#allocation6], 1
    %222 = vsyncpa [#allocation4], 1
    %223 = vsyncpa [#allocation9], 1

</llo_original>
